<compile_context>
chip_gen: v7x
topology: tpu7x:2x2x1
jax: 0.10.0
libtpu: 0.0.40
codegen_flags: <defaults>
</compile_context>

<pallas_src>
import functools

import jax
import jax.numpy as jnp
from jax.experimental import pallas as pl
from jax.experimental.pallas import tpu as pltpu

_BLOCK_BYTES = 4 * 1024 * 1024        # per-half VMEM block budget
_VMEM_LIMIT_BYTES = 48 * 1024 * 1024  # in(2x) + out(1x), double-buffered ~24 MiB
_MIN_GRID_STEPS = 8                   # keep both v7x TCs busy + pipelined


def _gated_tanh_kernel(x_ref, o_ref):
    # x_ref block: (tile_n, 2, tile_r, tile_c). Static slices along the half
    # dim don't touch the (8,128)-tiled minor dims, so they are free.
    a = x_ref[:, 0:1, :, :].astype(jnp.float32)
    b = x_ref[:, 1:2, :, :].astype(jnp.float32)
    # sigmoid(b) == 0.5 * (1 + tanh(0.5*b)) -> a single tanh push to the EUP.
    # (2 tanh/elem leaves the single EUP slot ~2-3x headroom even at v7x's
    #  HBM rate for bf16 I/O, so the kernel stays HBM-bound.)
    gate = 0.5 * (jnp.tanh(0.5 * b) + 1.0)
    o_ref[...] = (jnp.tanh(a) * gate).astype(o_ref.dtype)


def _factor_inner(inner: int, sub: int):
    """Factor the per-half contiguous run into (rows, cols).

    Preference: cols a multiple of 128 (lane-dense, unmasked stores) with
    rows >= sub (sublane-dense).  When `inner` has no factor of 128, search
    divisor pairs for rows >= sub with the fullest possible lane tiles instead
    of degrading to a 1-sublane (1, inner) slab.
    """
    if inner % 128 == 0:
        for cols in (1024, 512, 256, 128):
            if inner % cols == 0 and inner // cols >= sub:
                return inner // cols, cols
        return inner // 128, 128
    best = (1, inner)
    best_key = (-1.0, -1.0, -1)
    d = 1
    while d * d <= inner:
        if inner % d == 0:
            for rows, cols in ((d, inner // d), (inner // d, d)):
                if cols > 65536:          # keep a full-cols block DMA-able
                    continue
                lane_util = cols / float(-(-cols // 128) * 128)
                key = (1.0 if rows >= sub else 0.0, lane_util, min(cols, 2048))
                if key > best_key:
                    best_key, best = key, (rows, cols)
        d += 1
    return best


@functools.partial(jax.jit, static_argnames=("dim",))
def gated_tanh_pallas(x: jax.Array, dim: int = 1) -> jax.Array:
    """Pallas implementation of gated_tanh(x, dim): chunk along `dim`,
    out = tanh(first_half) * sigmoid(second_half)."""
    dim = dim % x.ndim
    c = x.shape[dim]
    assert c % 2 == 0, "split axis must be even"
    half = c // 2

    lead = 1
    for s in x.shape[:dim]:
        lead *= s
    tail = 1
    for s in x.shape[dim + 1:]:
        tail *= s
    inner = half * tail  # contiguous run per (lead-index, half-index)

    itemsize = jnp.dtype(x.dtype).itemsize
    sub = max(8, 32 // itemsize)                 # f32: 8, bf16: 16
    target_elems = max(1, _BLOCK_BYTES // itemsize)  # per-half elems per block

    rows, cols = _factor_inner(inner, sub)
    x4 = x.reshape(lead, 2, rows, cols)          # contiguous reshape: no copy

    # Lane (last) dim: cover cols in one block when a sublane-unit-tall block
    # fits the budget, otherwise tile in 128-lane chunks (edge block masked).
    min_r = min(rows, sub)
    if min_r * cols <= target_elems:
        tile_c = cols                            # full extent: always legal
    else:
        tile_c = max(128, (target_elems // min_r) // 128 * 128)
    grid_c = pl.cdiv(cols, tile_c)

    # Sublane dim: full rows if it fits, else a multiple of the sublane unit.
    cap_r = max(1, target_elems // tile_c)
    if rows <= cap_r:
        tile_r = rows
    else:
        tile_r = max(sub, (cap_r // sub) * sub)
    grid_r = pl.cdiv(rows, tile_r)

    # Lead dim: fill the remaining budget, but keep >= min(8, total work) grid
    # steps so both v7x TensorCores get balanced, pipelined work (no-op on
    # single-TC v5e/v6e beyond pipeline overlap).
    cap_n = max(1, target_elems // (tile_r * tile_c))
    steps_per_lead = grid_r * grid_c
    target_steps = min(_MIN_GRID_STEPS, lead * steps_per_lead)
    if steps_per_lead < target_steps:
        need_lead_blocks = -(-target_steps // steps_per_lead)
        cap_n = min(cap_n, max(1, lead // need_lead_blocks))
    tile_n = min(lead, cap_n)
    grid_n = pl.cdiv(lead, tile_n)

    # Single-block case (e.g. lead == 1, slab fits one block): split rows so
    # the grid still has >= 2 parallel steps for the two v7x TensorCores.
    if grid_n * grid_r * grid_c == 1 and rows >= 2 * sub:
        tile_r = max(sub, ((rows // 2 + sub - 1) // sub) * sub)
        grid_r = pl.cdiv(rows, tile_r)

    grid = (grid_n, grid_r, grid_c)
    in_blk = (tile_n, 2, tile_r, tile_c)
    out_blk = (tile_n, 1, tile_r, tile_c)

    n_out = lead * inner
    cost = pl.CostEstimate(
        flops=6 * n_out,
        transcendentals=2 * n_out,
        bytes_accessed=3 * n_out * itemsize,
    )

    out4 = pl.pallas_call(
        _gated_tanh_kernel,
        out_shape=jax.ShapeDtypeStruct((lead, 1, rows, cols), x.dtype),
        grid=grid,
        in_specs=[pl.BlockSpec(in_blk, lambda n, i, j: (n, 0, i, j))],
        out_specs=pl.BlockSpec(out_blk, lambda n, i, j: (n, 0, i, j)),
        compiler_params=pltpu.CompilerParams(
            dimension_semantics=("parallel", "parallel", "parallel"),
            vmem_limit_bytes=_VMEM_LIMIT_BYTES,
        ),
        cost_estimate=cost,
    )(x4)

    out_shape_nd = x.shape[:dim] + (half,) + x.shape[dim + 1:]
    return out4.reshape(out_shape_nd)


def gated_tanh_ref(x: jax.Array, dim: int = 1) -> jax.Array:
    a, b = jnp.split(x, 2, axis=dim)
    return jnp.tanh(a) * jax.nn.sigmoid(b)


if __name__ == "__main__":
    key = jax.random.PRNGKey(0)

    # NCHW input: batch=2, channels=8 (chunk -> 2 x 4), spatial 16x16.
    x = jax.random.normal(key, (2, 8, 16, 16), dtype=jnp.float32)
    out = jax.block_until_ready(gated_tanh_pallas(x, dim=1))
    ref = gated_tanh_ref(x, dim=1)
    assert out.shape == (2, 4, 16, 16)
    assert jnp.allclose(out, ref, atol=1e-5, rtol=1e-5)

    # bf16 path: fused two-half block, single in-kernel f32 upcast.
    xb = jax.random.normal(jax.random.PRNGKey(1), (2, 16, 32, 32),
                           dtype=jnp.bfloat16)
    outb = jax.block_until_ready(gated_tanh_pallas(xb, dim=1))
    refb = gated_tanh_ref(xb.astype(jnp.float32), dim=1).astype(jnp.bfloat16)
    assert outb.shape == (2, 8, 32, 32)
    assert jnp.allclose(outb.astype(jnp.float32), refb.astype(jnp.float32),
                        atol=2e-2, rtol=2e-2)

    # Awkward shape (per-half run not a multiple of 128) exercises the
    # hardened sublane-dense factorization / full-extent block path.
    xo = jax.random.normal(jax.random.PRNGKey(2), (2, 6, 5, 7),
                           dtype=jnp.float32)
    outo = jax.block_until_ready(gated_tanh_pallas(xo, dim=1))
    refo = gated_tanh_ref(xo, dim=1)
    assert outo.shape == (2, 3, 5, 7)
    assert jnp.allclose(outo, refo, atol=1e-5, rtol=1e-5)

    # Split along the last axis (dim=-1).
    xl = jax.random.normal(jax.random.PRNGKey(3), (2, 3, 8), dtype=jnp.float32)
    outl = jax.block_until_ready(gated_tanh_pallas(xl, dim=-1))
    refl = gated_tanh_ref(xl, dim=-1)
    assert outl.shape == (2, 3, 4)
    assert jnp.allclose(outl, refl, atol=1e-5, rtol=1e-5)

    print("KERNEL_OK")
</pallas_src>

<mosaic_0001>
module attributes {stable_mosaic.version = 11 : i64} {
  func.func @_gated_tanh_kernel(%arg0: i32, %arg1: i32, %arg2: i32, %arg3: memref<1x2x8x128xf32, #tpu.memory_space<vmem>>, %arg4: memref<1x1x8x128xf32, #tpu.memory_space<vmem>>) attributes {dimension_semantics = [#tpu.dimension_semantics<parallel>, #tpu.dimension_semantics<parallel>, #tpu.dimension_semantics<parallel>], iteration_bounds = array<i64: 2, 1, 1>, scalar_prefetch = 0 : i64, scratch_operands = 0 : i64, tpu.core_type = #tpu.core_type<tc>, window_params = [{transform_indices = @transform_0, window_bounds = array<i64: 1, 2, 8, 128>}, {transform_indices = @transform_1, window_bounds = array<i64: 1, 1, 8, 128>}]} {
    %c0 = arith.constant 0 : index
    %c0_0 = arith.constant 0 : index
    %c0_1 = arith.constant 0 : index
    %c0_2 = arith.constant 0 : index
    %0 = vector.load %arg3[%c0, %c0_0, %c0_1, %c0_2] : memref<1x2x8x128xf32, #tpu.memory_space<vmem>>, vector<1x1x8x128xf32>
    %c0_3 = arith.constant 0 : index
    %c1 = arith.constant 1 : index
    %c0_4 = arith.constant 0 : index
    %c0_5 = arith.constant 0 : index
    %1 = vector.load %arg3[%c0_3, %c1, %c0_4, %c0_5] : memref<1x2x8x128xf32, #tpu.memory_space<vmem>>, vector<1x1x8x128xf32>
    %cst = arith.constant 5.000000e-01 : f32
    %2 = vector.broadcast %cst : f32 to vector<1x1x8x128xf32>
    %3 = arith.mulf %2, %1 : vector<1x1x8x128xf32>
    %4 = math.tanh %3 : vector<1x1x8x128xf32>
    %cst_6 = arith.constant 1.000000e+00 : f32
    %5 = vector.broadcast %cst_6 : f32 to vector<1x1x8x128xf32>
    %6 = arith.addf %4, %5 : vector<1x1x8x128xf32>
    %cst_7 = arith.constant 5.000000e-01 : f32
    %7 = vector.broadcast %cst_7 : f32 to vector<1x1x8x128xf32>
    %8 = arith.mulf %7, %6 : vector<1x1x8x128xf32>
    %9 = math.tanh %0 : vector<1x1x8x128xf32>
    %10 = arith.mulf %9, %8 : vector<1x1x8x128xf32>
    %c0_8 = arith.constant 0 : index
    %c0_9 = arith.constant 0 : index
    %c0_10 = arith.constant 0 : index
    %c0_11 = arith.constant 0 : index
    %11 = vector.load %arg4[%c0_8, %c0_9, %c0_10, %c0_11] : memref<1x1x8x128xf32, #tpu.memory_space<vmem>>, vector<1x1x8x128xf32>
    tpu.vector_store %arg4[%c0_8, %c0_9, %c0_10, %c0_11], %10 {strides = array<i32>} : memref<1x1x8x128xf32, #tpu.memory_space<vmem>>, vector<1x1x8x128xf32>,
    return
  }
  func.func @transform_0(%arg0: i32, %arg1: i32, %arg2: i32) -> (i32, i32, i32, i32) {
    %c0_i32 = arith.constant 0 : i32
    %c0_i32_0 = arith.constant 0 : i32
    return %arg0, %c0_i32, %arg1, %arg2 : i32, i32, i32, i32
  }
  func.func @transform_1(%arg0: i32, %arg1: i32, %arg2: i32) -> (i32, i32, i32, i32) {
    %c0_i32 = arith.constant 0 : i32
    %c0_i32_0 = arith.constant 0 : i32
    return %arg0, %c0_i32, %arg1, %arg2 : i32, i32, i32, i32
  }
}

</mosaic_0001>

<llo_original>
// kernel: gated_tanh_pallas.1
$region0: #{gated_tanh_pallas.1}
  #allocation0 [shape = 'u32[]', space=smem, size = 0x4, offset = 0x4, fixed_abs, tag = 'smem constant byte address 0x4 - core index']
  #allocation1 [shape = 'u32[144,128]{1,0:T(1,128)}', space=vmem, size = 0x12000, scoped, tag = 'internal scratch']
  %s0 = inlined_call_operand.vmem [shape: f32[2,2,8,128], index: 0, kind: input, shape index: {}]
  %s1 = inlined_call_operand.vmem [shape: f32[2,1,8,128], index: 1, kind: output, shape index: {}]
  %s2 = sld [smem:[#allocation0]]
  $region37: #{gated_tanh_pallas.1} parent=0
    _
  %s4 = ssub.s32 1, %s2
  %s5 = scalar_select 0, %s4, %s2
  loop: start=0, step=1, limit=4
  $region2: #{gated_tanh_pallas.1} parent=0 // loop_pre_header
    _
  $region3: #{gated_tanh_pallas.1} parent=0 // loop_header
    %s7 = sphi 0, %s11
    %p8 = scmp.ge.s32.totalorder %s7, 4
    %s14 = sphi 0, %s33
    %s15 = sphi 0, %s29
    %s16 = sphi 0, %s25
    %s17 = sphi 0, %s14
    %s18 = sphi 0, %s15
    %s19 = sphi 0, %s16
    %s20 = sphi 0, %s17
    %s21 = sphi 0, %s18
    %s22 = sphi 0, %s19
    %s40 = sphi 0, %s42
    %s43 = sphi 0, %s40
    %s44 = sphi 0, %s43
    %s60 = sphi 0, %s44
    %s70 = sphi 0, %s72
    %s73 = sphi 0, %s70
    %s74 = sphi 0, %s73
    %s90 = sphi 0, %s74
  $region4: #{gated_tanh_pallas.1} parent=0 // loop_header_branch
    %10 = sbr.rel (%p8) target = $region8
  $region5: #{gated_tanh_pallas.1} parent=0 // loop_body
    %s12 = ssub.s32 %s7, 1
    %s13 = ssub.s32 %s7, 2
    %s23 = sadd.s32 1, %s16
    %p24 = scmp.ge.s32.totalorder %s23, 1
    %s25 = scalar_select %p24, 0, %s23
    %s26 = sadd.s32 1, %s15
    %s27 = scalar_select %p24, %s26, %s15
    %p28 = scmp.ge.s32.totalorder %s27, 1
    %s29 = scalar_select %p28, 0, %s27
    %s30 = sadd.s32 1, %s14
    %s31 = scalar_select %p28, %s30, %s14
    %p32 = scmp.ge.s32.totalorder %s31, 2
    %s33 = scalar_select %p32, 0, %s31
    %s34 = ssub.s32 %s14, %s33
    %s35 = ssub.s32 %s15, %s29
    %s36 = sor.u32 %s34, %s35
    %s37 = ssub.s32 %s16, %s25
    %s38 = sor.u32 %s36, %s37
    %p39 = scmp.eq.s32.totalorder %s38, 0
    %s41 = sadd.s32 %s40, 1
    %s42 = scalar_select %p39, %s40, %s41
    %p45 = pneg %p39
    %p46 = scmp.eq.s32.totalorder %s7, 1
    %p47 = por %p45, %p46
    %p48 = scmp.ne.s32.totalorder %s40, %s43
    %p49 = scmp.eq.s32.totalorder %s7, 0
    %p50 = por %p48, %p49
    %p51 = scmp.ne.s32.totalorder %s40, %s43
    %p52 = scmp.eq.s32.totalorder %s12, 1
    %p53 = por %p51, %p52
    %p54 = scmp.ne.s32.totalorder %s43, %s44
    %p55 = scmp.eq.s32.totalorder %s12, 0
    %p56 = por %p54, %p55
    %p57 = scmp.ne.s32.totalorder %s43, %s44
    %p58 = scmp.eq.s32.totalorder %s13, 1
    %p59 = por %p57, %p58
    %p61 = scmp.ne.s32.totalorder %s44, %s60
    %p62 = scmp.eq.s32.totalorder %s13, 0
    %p63 = por %p61, %p62
    %s64 = ssub.s32 %s14, %s33
    %s65 = ssub.s32 %s15, %s29
    %s66 = sor.u32 %s64, %s65
    %s67 = ssub.s32 %s16, %s25
    %s68 = sor.u32 %s66, %s67
    %p69 = scmp.eq.s32.totalorder %s68, 0
    %s71 = sadd.s32 %s70, 1
    %s72 = scalar_select %p69, %s70, %s71
    %p75 = pneg %p69
    %p76 = scmp.eq.s32.totalorder %s7, 1
    %p77 = por %p75, %p76
    %p78 = scmp.ne.s32.totalorder %s70, %s73
    %p79 = scmp.eq.s32.totalorder %s7, 0
    %p80 = por %p78, %p79
    %p81 = scmp.ne.s32.totalorder %s70, %s73
    %p82 = scmp.eq.s32.totalorder %s12, 1
    %p83 = por %p81, %p82
    %p84 = scmp.ne.s32.totalorder %s73, %s74
    %p85 = scmp.eq.s32.totalorder %s12, 0
    %p86 = por %p84, %p85
    %p87 = scmp.ne.s32.totalorder %s73, %s74
    %p88 = scmp.eq.s32.totalorder %s13, 1
    %p89 = por %p87, %p88
    %p91 = scmp.ne.s32.totalorder %s74, %s90
    %p92 = scmp.eq.s32.totalorder %s13, 0
    %p93 = por %p91, %p92
    %p94 = scmp.le.s32.totalorder 1, %s7
    %p95 = scmp.lt.s32.totalorder %s7, 3
    %p96 = pnand %p94, %p95
    %p97 = pneg %p96
    // Predicated region
    $region9: #{gated_tanh_pallas.1} parent=5 // pred_check
      _
    $region10: #{gated_tanh_pallas.1} parent=5 // pred_check_branch
      %99 = sbr.rel (%p96) target = $region12
    $region11: #{gated_tanh_pallas.1} parent=5 // pred_region
      %s100 = ssub.s32 %s7, 1
    $region12: #{gated_tanh_pallas.1} parent=5 // pred_fallthru
      _
    %p101 = scmp.lt.s32.totalorder %s7, 2
    // Predicated region
    $region13: #{gated_tanh_pallas.1} parent=5 // pred_check
      %p102 = pneg %p101
    $region14: #{gated_tanh_pallas.1} parent=5 // pred_check_branch
      %104 = sbr.rel (%p102) target = $region16
    $region15: #{gated_tanh_pallas.1} parent=5 // pred_region
      // Predicated region
      $region17: #{gated_tanh_pallas.1} parent=15 // pred_check
        %p105 = pneg %p50
      $region18: #{gated_tanh_pallas.1} parent=15 // pred_check_branch
        %107 = sbr.rel (%p105) target = $region20
      $region19: #{gated_tanh_pallas.1} parent=15 // pred_region
        %p108 = scmp.lt.s32.totalorder %s14, 1
        %s109 = scalar_select %p108, %s14, 1
        %p110 = scmp.lt.s32.totalorder %s15, 0
        %s111 = scalar_select %p110, %s15, 0
        %p112 = scmp.lt.s32.totalorder %s16, 0
        %s113 = scalar_select %p112, %s16, 0
        %s114 = sadd.s32 %s113, %s111
        %s115 = smul.addr %s109, 2
        %s116 = sadd.s32 %s114, %s115
        %s117 = smul.addr %s116, 8
        %s118 = scalar_lea.vmem %s0, %s117
      $region20: #{gated_tanh_pallas.1} parent=15 // pred_fallthru
        _
    $region16: #{gated_tanh_pallas.1} parent=5 // pred_fallthru
      _
    %p119 = scmp.le.s32.totalorder 1, %s7
    %p120 = scmp.lt.s32.totalorder %s7, 3
    %p121 = pnand %p119, %p120
    %p122 = pneg %p121
    // Predicated region
    $region21: #{gated_tanh_pallas.1} parent=5 // pred_check
      _
    $region22: #{gated_tanh_pallas.1} parent=5 // pred_check_branch
      %124 = sbr.rel (%p121) target = $region24
    $region23: #{gated_tanh_pallas.1} parent=5 // pred_region
      %s125 = ssub.s32 %s7, 1
      %p126 = scmp.lt.s32.totalorder %s17, 1
      %s127 = scalar_select %p126, %s17, 1
      %p128 = scmp.lt.s32.totalorder %s18, 0
      %s129 = scalar_select %p128, %s18, 0
      %p130 = scmp.lt.s32.totalorder %s19, 0
      %s131 = scalar_select %p130, %s19, 0
      %s132 = sadd.s32 %s131, %s129
      %s133 = smul.addr %s127, 2
      %s134 = sadd.s32 %s132, %s133
      %s135 = smul.addr %s134, 8
      %s136 = scalar_lea.vmem %s0, %s135
      %p137 = pneg %p56
      %p138 = pneg %p53
      %p139 = pneg %p86
      %p140 = pneg %p83
      %p141 = scmp.lt.s32.totalorder %s17, 1
      %s142 = scalar_select %p141, %s17, 1
      %p143 = scmp.lt.s32.totalorder %s18, 0
      %s144 = scalar_select %p143, %s18, 0
      %p145 = scmp.lt.s32.totalorder %s19, 0
      %s146 = scalar_select %p145, %s19, 0
      %s147 = sadd.s32 %s146, %s144
      %s148 = sadd.s32 %s147, %s142
      %s149 = smul.addr %s148, 8
      %s150 = scalar_lea.vmem %s1, %s149
      %p151 = scmp.lt.s32.totalorder %s17, 1
      %s152 = scalar_select %p151, %s17, 1
      %p153 = scmp.lt.s32.totalorder %s18, 0
      %s154 = scalar_select %p153, %s18, 0
      %p155 = scmp.lt.s32.totalorder %s19, 0
      %s156 = scalar_select %p155, %s19, 0
      %s157 = sadd.s32 %s156, %s154
      %s158 = smul.addr %s152, 2
      %s159 = sadd.s32 %s157, %s158
      %s160 = smul.addr %s159, 8
      %s161 = scalar_lea.vmem %s0, %s160
      %p162 = scmp.lt.s32.totalorder %s17, 1
      %s163 = scalar_select %p162, %s17, 1
      %p164 = scmp.lt.s32.totalorder %s18, 0
      %s165 = scalar_select %p164, %s18, 0
      %p166 = scmp.lt.s32.totalorder %s19, 0
      %s167 = scalar_select %p166, %s19, 0
      %s168 = sadd.s32 %s167, %s165
      %s169 = sadd.s32 %s168, %s163
      %s170 = smul.addr %s169, 8
      %s171 = scalar_lea.vmem %s1, %s170
      %v172 = vld [vmem:[%s161] sm:$0xff]
      %s173 = scalar_lea.vmem %s161, 8
      %v174 = vld [vmem:[%s173] sm:$0xff]
      %v175 = vmul.f32 %v174, 0.5
      %v176 = vtanh.pop %v175
      %v177 = vadd.f32 %v176, 1.0
      %v178 = vmul.f32 %v177, 0.5
      %v179 = vtanh.pop %v172
      %v180 = vmul.f32 %v179, %v178
      %181 = vst [vmem:[%s171] sm:$0xff] %v180
      %p182 = scmp.lt.s32.totalorder %s17, 1
      %s183 = scalar_select %p182, %s17, 1
      %p184 = scmp.lt.s32.totalorder %s18, 0
      %s185 = scalar_select %p184, %s18, 0
      %p186 = scmp.lt.s32.totalorder %s19, 0
      %s187 = scalar_select %p186, %s19, 0
      %s188 = sadd.s32 %s187, %s185
      %s189 = sadd.s32 %s188, %s183
      %s190 = smul.addr %s189, 8
      %s191 = scalar_lea.vmem %s1, %s190
      // Predicated region
      $region25: #{gated_tanh_pallas.1} parent=23 // pred_check
        %p192 = pneg %p83
      $region26: #{gated_tanh_pallas.1} parent=23 // pred_check_branch
        %194 = sbr.rel (%p192) target = $region28
      $region27: #{gated_tanh_pallas.1} parent=23 // pred_region
        _
      $region28: #{gated_tanh_pallas.1} parent=23 // pred_fallthru
        _
    $region24: #{gated_tanh_pallas.1} parent=5 // pred_fallthru
      _
    %p195 = scmp.le.s32.totalorder 2, %s7
    // Predicated region
    $region29: #{gated_tanh_pallas.1} parent=5 // pred_check
      %p196 = pneg %p195
    $region30: #{gated_tanh_pallas.1} parent=5 // pred_check_branch
      %198 = sbr.rel (%p196) target = $region32
    $region31: #{gated_tanh_pallas.1} parent=5 // pred_region
      %s199 = ssub.s32 %s7, 2
      // Predicated region
      $region33: #{gated_tanh_pallas.1} parent=31 // pred_check
        %p200 = pneg %p89
      $region34: #{gated_tanh_pallas.1} parent=31 // pred_check_branch
        %202 = sbr.rel (%p200) target = $region36
      $region35: #{gated_tanh_pallas.1} parent=31 // pred_region
        %p203 = scmp.lt.s32.totalorder %s20, 1
        %s204 = scalar_select %p203, %s20, 1
        %p205 = scmp.lt.s32.totalorder %s21, 0
        %s206 = scalar_select %p205, %s21, 0
        %p207 = scmp.lt.s32.totalorder %s22, 0
        %s208 = scalar_select %p207, %s22, 0
        %s209 = sadd.s32 %s208, %s206
        %s210 = sadd.s32 %s209, %s204
        %s211 = smul.addr %s210, 8
        %s212 = scalar_lea.vmem %s1, %s211
      $region36: #{gated_tanh_pallas.1} parent=31 // pred_fallthru
        _
    $region32: #{gated_tanh_pallas.1} parent=5 // pred_fallthru
      _
  $region6: #{gated_tanh_pallas.1} parent=0 // loop_footer
    %s11 = sadd.s32 1, %s7
  $region7: #{gated_tanh_pallas.1} parent=0 // loop_footer_branch
    %6 = sbr.rel target = $region3
  $region8: #{gated_tanh_pallas.1} parent=0 // loop_exit
    _

</llo_original>
